<compile_context>
chip_gen: v7x
topology: tpu7x:2x2x1
jax: 0.10.0
libtpu: 0.0.40
codegen_flags: <defaults>
</compile_context>

<pallas_src>
import functools

import jax
import jax.numpy as jnp
from jax.experimental import pallas as pl
from jax.experimental.pallas import tpu as pltpu


def _upsample_kernel(x_ref, o_ref):
    # x_ref: (TH//2, W, C) input rows.
    # o_ref: (TH, W, 2C) output rows — a free view of (TH, 2W, C) NHWC memory.
    x = x_ref[...]
    # Width duplication: concat along the minor (lane) axis -> two contiguous
    # C-wide slabs per output pixel pair; no sublane interleave.
    y = jnp.concatenate([x, x], axis=-1)            # (TH//2, W, 2C)
    # Height duplication: repeat along the leading (non-layout) axis ->
    # whole-slab vreg copies, no cross-lane/sublane shuffles.
    o_ref[...] = jnp.repeat(y, 2, axis=0)           # (TH, W, 2C)


def _choose_row_tile(two_h, out_row_bytes, budget_bytes):
    """Largest multiple-of-16 divisor of 2H whose output tile fits the VMEM budget."""
    fitting, smallest_div = None, None
    d = 16
    while d <= two_h:
        if two_h % d == 0:
            if smallest_div is None:
                smallest_div = d
            if d * out_row_bytes <= budget_bytes:
                fitting = d
        d += 16
    if fitting is not None:
        return fitting
    if smallest_div is not None:
        return smallest_div      # nothing fits the budget; take the smallest legal tile
    return two_h                 # tiny images: full extent is always a legal block


@functools.partial(jax.jit, static_argnames=("row_tile", "out_tile_budget_bytes"))
def upsample_nearest_2x(x, *, row_tile=None, out_tile_budget_bytes=2 << 20):
    """Nearest-neighbour 2x spatial upsample of an NHWC tensor via a Pallas TPU kernel."""
    n, h, w, c = x.shape
    two_h = 2 * h
    itemsize = jnp.dtype(x.dtype).itemsize

    if row_tile is None:
        row_tile = _choose_row_tile(two_h, w * 2 * c * itemsize, out_tile_budget_bytes)
    th = int(row_tile)
    if two_h % th != 0 or (th != two_h and th % 2 != 0):
        raise ValueError(f"row_tile={th} must be an even divisor of 2*H={two_h}")
    thi = h if th == two_h else th // 2              # input rows per tile
    grid = (n, two_h // th)

    # 5 bytes of HBM traffic per input element (1 read + 4 written), 0 flops.
    cost = pl.CostEstimate(
        flops=0,
        transcendentals=0,
        bytes_accessed=5 * n * h * w * c * itemsize,
    )

    out_wide = pl.pallas_call(
        _upsample_kernel,
        # (N, 2H, W, 2C) has exactly the memory layout of (N, 2H, 2W, C);
        # the reshape at the end is a free metadata change under jit.
        out_shape=jax.ShapeDtypeStruct((n, two_h, w, 2 * c), x.dtype),
        grid_spec=pltpu.PrefetchScalarGridSpec(
            num_scalar_prefetch=0,
            grid=grid,
            in_specs=[
                pl.BlockSpec((None, thi, w, c), lambda b, r: (b, r, 0, 0)),
            ],
            out_specs=pl.BlockSpec((None, th, w, 2 * c), lambda b, r: (b, r, 0, 0)),
        ),
        compiler_params=pltpu.CompilerParams(
            dimension_semantics=("parallel", "parallel"),
        ),
        cost_estimate=cost,
    )(x)
    return out_wide.reshape(n, two_h, 2 * w, c)


def upsample_reference(x):
    """Plain-JAX reference matching torch nearest upsample (scale_factor=2) in NHWC."""
    y = jnp.repeat(x, 2, axis=1)
    return jnp.repeat(y, 2, axis=2)


if __name__ == "__main__":
    key = jax.random.PRNGKey(0)
    # Module expects NHWC input: [N, D, D, C]
    N, D, C = 2, 16, 4
    x = jax.random.normal(key, (N, D, D, C), dtype=jnp.float32)

    ref = upsample_reference(x)

    # Auto-chosen row tile (budget-driven).
    out = jax.block_until_ready(upsample_nearest_2x(x))
    assert out.shape == (N, 2 * D, 2 * D, C), out.shape
    assert out.dtype == x.dtype
    assert jnp.array_equal(out, ref), "Pallas upsample mismatch vs reference (auto tile)"

    # Explicit smaller row tile: exercises the multi-tile grid / index_map path.
    out_tiled = jax.block_until_ready(upsample_nearest_2x(x, row_tile=16))
    assert jnp.array_equal(out_tiled, ref), "Pallas upsample mismatch vs reference (row_tile=16)"

    print("KERNEL_OK")
</pallas_src>

<mosaic_0001>
module attributes {stable_mosaic.version = 11 : i64} {
  func.func @_upsample_kernel(%arg0: i32, %arg1: i32, %arg2: memref<1x16x16x4xf32, #tpu.memory_space<vmem>>, %arg3: memref<1x32x16x8xf32, #tpu.memory_space<vmem>>) attributes {dimension_semantics = [#tpu.dimension_semantics<parallel>, #tpu.dimension_semantics<parallel>], iteration_bounds = array<i64: 2, 1>, scalar_prefetch = 0 : i64, scratch_operands = 0 : i64, tpu.core_type = #tpu.core_type<tc>, window_params = [{transform_indices = @transform_0, window_bounds = array<i64: 1, 16, 16, 4>}, {transform_indices = @transform_1, window_bounds = array<i64: 1, 32, 16, 8>}]} {
    %c0 = arith.constant 0 : index
    %c0_0 = arith.constant 0 : index
    %c0_1 = arith.constant 0 : index
    %c0_2 = arith.constant 0 : index
    %0 = vector.load %arg2[%c0, %c0_0, %c0_1, %c0_2] : memref<1x16x16x4xf32, #tpu.memory_space<vmem>>, vector<1x16x16x4xf32>
    %1 = vector.shape_cast %0 : vector<1x16x16x4xf32> to vector<16x16x4xf32>
    %2 = tpu.concatenate %1, %1 in 2 : vector<16x16x4xf32>, vector<16x16x4xf32> -> vector<16x16x8xf32>
    %3 = vector.shape_cast %2 : vector<16x16x8xf32> to vector<16x1x16x8xf32>
    %4 = vector.broadcast %3 : vector<16x1x16x8xf32> to vector<16x2x16x8xf32>
    %5 = vector.shape_cast %4 : vector<16x2x16x8xf32> to vector<32x16x8xf32>
    %c0_3 = arith.constant 0 : index
    %c0_4 = arith.constant 0 : index
    %c0_5 = arith.constant 0 : index
    %c0_6 = arith.constant 0 : index
    %6 = vector.load %arg3[%c0_3, %c0_4, %c0_5, %c0_6] : memref<1x32x16x8xf32, #tpu.memory_space<vmem>>, vector<1x32x16x8xf32>
    %7 = vector.shape_cast %6 : vector<1x32x16x8xf32> to vector<32x16x8xf32>
    %8 = vector.shape_cast %5 : vector<32x16x8xf32> to vector<1x32x16x8xf32>
    tpu.vector_store %arg3[%c0_3, %c0_4, %c0_5, %c0_6], %8 {strides = array<i32>} : memref<1x32x16x8xf32, #tpu.memory_space<vmem>>, vector<1x32x16x8xf32>,
    return
  }
  func.func @transform_0(%arg0: i32, %arg1: i32) -> (i32, i32, i32, i32) {
    %c0_i32 = arith.constant 0 : i32
    %c0_i32_0 = arith.constant 0 : i32
    %c0_i32_1 = arith.constant 0 : i32
    return %arg0, %arg1, %c0_i32, %c0_i32_0 : i32, i32, i32, i32
  }
  func.func @transform_1(%arg0: i32, %arg1: i32) -> (i32, i32, i32, i32) {
    %c0_i32 = arith.constant 0 : i32
    %c0_i32_0 = arith.constant 0 : i32
    %c0_i32_1 = arith.constant 0 : i32
    return %arg0, %arg1, %c0_i32, %c0_i32_0 : i32, i32, i32, i32
  }
}

</mosaic_0001>

<llo_original>
// kernel: upsample_nearest_2x.1
$region0: #{upsample_nearest_2x.1}
  #allocation0 [shape = 'u32[]', space=smem, size = 0x4, offset = 0x4, fixed_abs, tag = 'smem constant byte address 0x4 - core index']
  #allocation1 [shape = 'u32[144,128]{1,0:T(1,128)}', space=vmem, size = 0x12000, scoped, tag = 'internal scratch']
  %s0 = inlined_call_operand.vmem [shape: f32[2,16,16,4], index: 0, kind: input, shape index: {}]
  %s1 = inlined_call_operand.vmem [shape: f32[2,32,16,8], index: 1, kind: output, shape index: {}]
  %s2 = sld [smem:[#allocation0]]
  $region37: #{upsample_nearest_2x.1} parent=0
    _
  %s4 = ssub.s32 1, %s2
  %s5 = scalar_select 0, %s4, %s2
  loop: start=0, step=1, limit=4
  $region2: #{upsample_nearest_2x.1} parent=0 // loop_pre_header
    _
  $region3: #{upsample_nearest_2x.1} parent=0 // loop_header
    %s7 = sphi 0, %s11
    %p8 = scmp.ge.s32.totalorder %s7, 4
    %s14 = sphi 0, %s26
    %s15 = sphi 0, %s22
    %s16 = sphi 0, %s14
    %s17 = sphi 0, %s15
    %s18 = sphi 0, %s16
    %s19 = sphi 0, %s17
    %s31 = sphi 0, %s33
    %s34 = sphi 0, %s31
    %s35 = sphi 0, %s34
    %s51 = sphi 0, %s35
    %s59 = sphi 0, %s61
    %s62 = sphi 0, %s59
    %s63 = sphi 0, %s62
    %s79 = sphi 0, %s63
  $region4: #{upsample_nearest_2x.1} parent=0 // loop_header_branch
    %10 = sbr.rel (%p8) target = $region8
  $region5: #{upsample_nearest_2x.1} parent=0 // loop_body
    %s12 = ssub.s32 %s7, 1
    %s13 = ssub.s32 %s7, 2
    %s20 = sadd.s32 1, %s15
    %p21 = scmp.ge.s32.totalorder %s20, 1
    %s22 = scalar_select %p21, 0, %s20
    %s23 = sadd.s32 1, %s14
    %s24 = scalar_select %p21, %s23, %s14
    %p25 = scmp.ge.s32.totalorder %s24, 2
    %s26 = scalar_select %p25, 0, %s24
    %s27 = ssub.s32 %s14, %s26
    %s28 = ssub.s32 %s15, %s22
    %s29 = sor.u32 %s27, %s28
    %p30 = scmp.eq.s32.totalorder %s29, 0
    %s32 = sadd.s32 %s31, 1
    %s33 = scalar_select %p30, %s31, %s32
    %p36 = pneg %p30
    %p37 = scmp.eq.s32.totalorder %s7, 1
    %p38 = por %p36, %p37
    %p39 = scmp.ne.s32.totalorder %s31, %s34
    %p40 = scmp.eq.s32.totalorder %s7, 0
    %p41 = por %p39, %p40
    %p42 = scmp.ne.s32.totalorder %s31, %s34
    %p43 = scmp.eq.s32.totalorder %s12, 1
    %p44 = por %p42, %p43
    %p45 = scmp.ne.s32.totalorder %s34, %s35
    %p46 = scmp.eq.s32.totalorder %s12, 0
    %p47 = por %p45, %p46
    %p48 = scmp.ne.s32.totalorder %s34, %s35
    %p49 = scmp.eq.s32.totalorder %s13, 1
    %p50 = por %p48, %p49
    %p52 = scmp.ne.s32.totalorder %s35, %s51
    %p53 = scmp.eq.s32.totalorder %s13, 0
    %p54 = por %p52, %p53
    %s55 = ssub.s32 %s14, %s26
    %s56 = ssub.s32 %s15, %s22
    %s57 = sor.u32 %s55, %s56
    %p58 = scmp.eq.s32.totalorder %s57, 0
    %s60 = sadd.s32 %s59, 1
    %s61 = scalar_select %p58, %s59, %s60
    %p64 = pneg %p58
    %p65 = scmp.eq.s32.totalorder %s7, 1
    %p66 = por %p64, %p65
    %p67 = scmp.ne.s32.totalorder %s59, %s62
    %p68 = scmp.eq.s32.totalorder %s7, 0
    %p69 = por %p67, %p68
    %p70 = scmp.ne.s32.totalorder %s59, %s62
    %p71 = scmp.eq.s32.totalorder %s12, 1
    %p72 = por %p70, %p71
    %p73 = scmp.ne.s32.totalorder %s62, %s63
    %p74 = scmp.eq.s32.totalorder %s12, 0
    %p75 = por %p73, %p74
    %p76 = scmp.ne.s32.totalorder %s62, %s63
    %p77 = scmp.eq.s32.totalorder %s13, 1
    %p78 = por %p76, %p77
    %p80 = scmp.ne.s32.totalorder %s63, %s79
    %p81 = scmp.eq.s32.totalorder %s13, 0
    %p82 = por %p80, %p81
    %p83 = scmp.le.s32.totalorder 1, %s7
    %p84 = scmp.lt.s32.totalorder %s7, 3
    %p85 = pnand %p83, %p84
    %p86 = pneg %p85
    // Predicated region
    $region9: #{upsample_nearest_2x.1} parent=5 // pred_check
      _
    $region10: #{upsample_nearest_2x.1} parent=5 // pred_check_branch
      %88 = sbr.rel (%p85) target = $region12
    $region11: #{upsample_nearest_2x.1} parent=5 // pred_region
      %s89 = ssub.s32 %s7, 1
    $region12: #{upsample_nearest_2x.1} parent=5 // pred_fallthru
      _
    %p90 = scmp.lt.s32.totalorder %s7, 2
    // Predicated region
    $region13: #{upsample_nearest_2x.1} parent=5 // pred_check
      %p91 = pneg %p90
    $region14: #{upsample_nearest_2x.1} parent=5 // pred_check_branch
      %93 = sbr.rel (%p91) target = $region16
    $region15: #{upsample_nearest_2x.1} parent=5 // pred_region
      // Predicated region
      $region17: #{upsample_nearest_2x.1} parent=15 // pred_check
        %p94 = pneg %p41
      $region18: #{upsample_nearest_2x.1} parent=15 // pred_check_branch
        %96 = sbr.rel (%p94) target = $region20
      $region19: #{upsample_nearest_2x.1} parent=15 // pred_region
        %s97 = smul.u32 16, %s15
        %p98 = scmp.lt.s32.totalorder %s14, 1
        %s99 = scalar_select %p98, %s14, 1
        %p100 = scmp.lt.s32.totalorder %s97, 15
        %s101 = scalar_select %p100, %s97, 15
        %s102 = smul.addr %s101, 2
        %s103 = smul.addr %s99, 32
        %s104 = sadd.s32 %s102, %s103
        %s105 = smul.addr %s104, 8
        %s106 = scalar_lea.vmem %s0, %s105
        %s107 = smul.u32 16, %s15
      $region20: #{upsample_nearest_2x.1} parent=15 // pred_fallthru
        _
    $region16: #{upsample_nearest_2x.1} parent=5 // pred_fallthru
      _
    %p108 = scmp.le.s32.totalorder 1, %s7
    %p109 = scmp.lt.s32.totalorder %s7, 3
    %p110 = pnand %p108, %p109
    %p111 = pneg %p110
    // Predicated region
    $region21: #{upsample_nearest_2x.1} parent=5 // pred_check
      _
    $region22: #{upsample_nearest_2x.1} parent=5 // pred_check_branch
      %113 = sbr.rel (%p110) target = $region24
    $region23: #{upsample_nearest_2x.1} parent=5 // pred_region
      %s114 = ssub.s32 %s7, 1
      %s115 = smul.u32 16, %s17
      %p116 = scmp.lt.s32.totalorder %s16, 1
      %s117 = scalar_select %p116, %s16, 1
      %p118 = scmp.lt.s32.totalorder %s115, 15
      %s119 = scalar_select %p118, %s115, 15
      %s120 = smul.addr %s119, 2
      %s121 = smul.addr %s117, 32
      %s122 = sadd.s32 %s120, %s121
      %s123 = smul.addr %s122, 8
      %s124 = scalar_lea.vmem %s0, %s123
      %p125 = pneg %p47
      %p126 = pneg %p44
      %p127 = pneg %p75
      %p128 = pneg %p72
      %s129 = smul.u32 32, %s17
      %p130 = scmp.lt.s32.totalorder %s16, 1
      %s131 = scalar_select %p130, %s16, 1
      %p132 = scmp.lt.s32.totalorder %s129, 31
      %s133 = scalar_select %p132, %s129, 31
      %s134 = smul.addr %s133, 2
      %s135 = smul.addr %s131, 64
      %s136 = sadd.s32 %s134, %s135
      %s137 = smul.addr %s136, 8
      %s138 = scalar_lea.vmem %s1, %s137
      %s139 = smul.u32 16, %s17
      %p140 = scmp.lt.s32.totalorder %s16, 1
      %s141 = scalar_select %p140, %s16, 1
      %p142 = scmp.lt.s32.totalorder %s139, 15
      %s143 = scalar_select %p142, %s139, 15
      %s144 = smul.addr %s143, 2
      %s145 = smul.addr %s141, 32
      %s146 = sadd.s32 %s144, %s145
      %s147 = smul.addr %s146, 8
      %s148 = scalar_lea.vmem %s0, %s147
      %s149 = smul.u32 16, %s17
      %s150 = smul.u32 32, %s17
      %p151 = scmp.lt.s32.totalorder %s16, 1
      %s152 = scalar_select %p151, %s16, 1
      %p153 = scmp.lt.s32.totalorder %s150, 31
      %s154 = scalar_select %p153, %s150, 31
      %s155 = smul.addr %s154, 2
      %s156 = smul.addr %s152, 64
      %s157 = sadd.s32 %s155, %s156
      %s158 = smul.addr %s157, 8
      %s159 = scalar_lea.vmem %s1, %s158
      %s160 = smul.u32 32, %s17
      %v161 = vld [vmem:[%s148] sm:$0xff]
      %v162 = vld [vmem:[%s148 + $0x8] sm:$0xff]
      %v163 = vld [vmem:[%s148 + $0x10] sm:$0xff]
      %v164 = vld [vmem:[%s148 + $0x18] sm:$0xff]
      %v165 = vld [vmem:[%s148 + $0x20] sm:$0xff]
      %v166 = vld [vmem:[%s148 + $0x28] sm:$0xff]
      %v167 = vld [vmem:[%s148 + $0x30] sm:$0xff]
      %v168 = vld [vmem:[%s148 + $0x38] sm:$0xff]
      %v169 = vld [vmem:[%s148 + $0x40] sm:$0xff]
      %v170 = vld [vmem:[%s148 + $0x48] sm:$0xff]
      %v171 = vld [vmem:[%s148 + $0x50] sm:$0xff]
      %v172 = vld [vmem:[%s148 + $0x58] sm:$0xff]
      %v173 = vld [vmem:[%s148 + $0x60] sm:$0xff]
      %v174 = vld [vmem:[%s148 + $0x68] sm:$0xff]
      %v175 = vld [vmem:[%s148 + $0x70] sm:$0xff]
      %v176 = vld [vmem:[%s148 + $0x78] sm:$0xff]
      %v177 = vld [vmem:[%s148 + $0x80] sm:$0xff]
      %v178 = vld [vmem:[%s148 + $0x88] sm:$0xff]
      %v179 = vld [vmem:[%s148 + $0x90] sm:$0xff]
      %v180 = vld [vmem:[%s148 + $0x98] sm:$0xff]
      %v181 = vld [vmem:[%s148 + $0xa0] sm:$0xff]
      %v182 = vld [vmem:[%s148 + $0xa8] sm:$0xff]
      %v183 = vld [vmem:[%s148 + $0xb0] sm:$0xff]
      %v184 = vld [vmem:[%s148 + $0xb8] sm:$0xff]
      %v185 = vld [vmem:[%s148 + $0xc0] sm:$0xff]
      %v186 = vld [vmem:[%s148 + $0xc8] sm:$0xff]
      %v187 = vld [vmem:[%s148 + $0xd0] sm:$0xff]
      %v188 = vld [vmem:[%s148 + $0xd8] sm:$0xff]
      %v189 = vld [vmem:[%s148 + $0xe0] sm:$0xff]
      %v190 = vld [vmem:[%s148 + $0xe8] sm:$0xff]
      %v191 = vld [vmem:[%s148 + $0xf0] sm:$0xff]
      %v192 = vld [vmem:[%s148 + $0xf8] sm:$0xff]
      %225 = vrot.lane.b32.xlu0 %v161, 4
      %v226 = vpop.permute.xlu0 %225
      %227 = vrot.lane.b32.xlu0 %v162, 4
      %v228 = vpop.permute.xlu0 %227
      %229 = vrot.lane.b32.xlu0 %v163, 4
      %v230 = vpop.permute.xlu0 %229
      %231 = vrot.lane.b32.xlu0 %v164, 4
      %v232 = vpop.permute.xlu0 %231
      %233 = vrot.lane.b32.xlu0 %v165, 4
      %v234 = vpop.permute.xlu0 %233
      %235 = vrot.lane.b32.xlu0 %v166, 4
      %v236 = vpop.permute.xlu0 %235
      %237 = vrot.lane.b32.xlu0 %v167, 4
      %v238 = vpop.permute.xlu0 %237
      %239 = vrot.lane.b32.xlu0 %v168, 4
      %v240 = vpop.permute.xlu0 %239
      %241 = vrot.lane.b32.xlu0 %v169, 4
      %v242 = vpop.permute.xlu0 %241
      %243 = vrot.lane.b32.xlu0 %v170, 4
      %v244 = vpop.permute.xlu0 %243
      %245 = vrot.lane.b32.xlu0 %v171, 4
      %v246 = vpop.permute.xlu0 %245
      %247 = vrot.lane.b32.xlu0 %v172, 4
      %v248 = vpop.permute.xlu0 %247
      %249 = vrot.lane.b32.xlu0 %v173, 4
      %v250 = vpop.permute.xlu0 %249
      %251 = vrot.lane.b32.xlu0 %v174, 4
      %v252 = vpop.permute.xlu0 %251
      %253 = vrot.lane.b32.xlu0 %v175, 4
      %v254 = vpop.permute.xlu0 %253
      %255 = vrot.lane.b32.xlu0 %v176, 4
      %v256 = vpop.permute.xlu0 %255
      %257 = vrot.lane.b32.xlu0 %v177, 4
      %v258 = vpop.permute.xlu0 %257
      %259 = vrot.lane.b32.xlu0 %v178, 4
      %v260 = vpop.permute.xlu0 %259
      %261 = vrot.lane.b32.xlu0 %v179, 4
      %v262 = vpop.permute.xlu0 %261
      %263 = vrot.lane.b32.xlu0 %v180, 4
      %v264 = vpop.permute.xlu0 %263
      %265 = vrot.lane.b32.xlu0 %v181, 4
      %v266 = vpop.permute.xlu0 %265
      %267 = vrot.lane.b32.xlu0 %v182, 4
      %v268 = vpop.permute.xlu0 %267
      %269 = vrot.lane.b32.xlu0 %v183, 4
      %v270 = vpop.permute.xlu0 %269
      %271 = vrot.lane.b32.xlu0 %v184, 4
      %v272 = vpop.permute.xlu0 %271
      %273 = vrot.lane.b32.xlu0 %v185, 4
      %v274 = vpop.permute.xlu0 %273
      %275 = vrot.lane.b32.xlu0 %v186, 4
      %v276 = vpop.permute.xlu0 %275
      %277 = vrot.lane.b32.xlu0 %v187, 4
      %v278 = vpop.permute.xlu0 %277
      %279 = vrot.lane.b32.xlu0 %v188, 4
      %v280 = vpop.permute.xlu0 %279
      %281 = vrot.lane.b32.xlu0 %v189, 4
      %v282 = vpop.permute.xlu0 %281
      %283 = vrot.lane.b32.xlu0 %v190, 4
      %v284 = vpop.permute.xlu0 %283
      %285 = vrot.lane.b32.xlu0 %v191, 4
      %v286 = vpop.permute.xlu0 %285
      %287 = vrot.lane.b32.xlu0 %v192, 4
      %v288 = vpop.permute.xlu0 %287
      %vm321 = vcmask 31744
      %v322 = vsel %vm321, %v161, %v226
      %v323 = vsel %vm321, %v162, %v228
      %v324 = vsel %vm321, %v163, %v230
      %v325 = vsel %vm321, %v164, %v232
      %v326 = vsel %vm321, %v165, %v234
      %v327 = vsel %vm321, %v166, %v236
      %v328 = vsel %vm321, %v167, %v238
      %v329 = vsel %vm321, %v168, %v240
      %v330 = vsel %vm321, %v169, %v242
      %v331 = vsel %vm321, %v170, %v244
      %v332 = vsel %vm321, %v171, %v246
      %v333 = vsel %vm321, %v172, %v248
      %v334 = vsel %vm321, %v173, %v250
      %v335 = vsel %vm321, %v174, %v252
      %v336 = vsel %vm321, %v175, %v254
      %v337 = vsel %vm321, %v176, %v256
      %v338 = vsel %vm321, %v177, %v258
      %v339 = vsel %vm321, %v178, %v260
      %v340 = vsel %vm321, %v179, %v262
      %v341 = vsel %vm321, %v180, %v264
      %v342 = vsel %vm321, %v181, %v266
      %v343 = vsel %vm321, %v182, %v268
      %v344 = vsel %vm321, %v183, %v270
      %v345 = vsel %vm321, %v184, %v272
      %v346 = vsel %vm321, %v185, %v274
      %v347 = vsel %vm321, %v186, %v276
      %v348 = vsel %vm321, %v187, %v278
      %v349 = vsel %vm321, %v188, %v280
      %v350 = vsel %vm321, %v189, %v282
      %v351 = vsel %vm321, %v190, %v284
      %v352 = vsel %vm321, %v191, %v286
      %v353 = vsel %vm321, %v192, %v288
      %vm354 = vcmask 64512
      %355 = vst.msk [vmem:[%s159] sm:$0xff] %vm354, %v322
      %356 = vst.msk [vmem:[%s159 + $0x8] sm:$0xff] %vm354, %v323
      %357 = vst.msk [vmem:[%s159 + $0x10] sm:$0xff] %vm354, %v322
      %358 = vst.msk [vmem:[%s159 + $0x18] sm:$0xff] %vm354, %v323
      %359 = vst.msk [vmem:[%s159 + $0x20] sm:$0xff] %vm354, %v324
      %360 = vst.msk [vmem:[%s159 + $0x28] sm:$0xff] %vm354, %v325
      %361 = vst.msk [vmem:[%s159 + $0x30] sm:$0xff] %vm354, %v324
      %362 = vst.msk [vmem:[%s159 + $0x38] sm:$0xff] %vm354, %v325
      %363 = vst.msk [vmem:[%s159 + $0x40] sm:$0xff] %vm354, %v326
      %364 = vst.msk [vmem:[%s159 + $0x48] sm:$0xff] %vm354, %v327
      %365 = vst.msk [vmem:[%s159 + $0x50] sm:$0xff] %vm354, %v326
      %366 = vst.msk [vmem:[%s159 + $0x58] sm:$0xff] %vm354, %v327
      %367 = vst.msk [vmem:[%s159 + $0x60] sm:$0xff] %vm354, %v328
      %368 = vst.msk [vmem:[%s159 + $0x68] sm:$0xff] %vm354, %v329
      %369 = vst.msk [vmem:[%s159 + $0x70] sm:$0xff] %vm354, %v328
      %370 = vst.msk [vmem:[%s159 + $0x78] sm:$0xff] %vm354, %v329
      %371 = vst.msk [vmem:[%s159 + $0x80] sm:$0xff] %vm354, %v330
      %372 = vst.msk [vmem:[%s159 + $0x88] sm:$0xff] %vm354, %v331
      %373 = vst.msk [vmem:[%s159 + $0x90] sm:$0xff] %vm354, %v330
      %374 = vst.msk [vmem:[%s159 + $0x98] sm:$0xff] %vm354, %v331
      %375 = vst.msk [vmem:[%s159 + $0xa0] sm:$0xff] %vm354, %v332
      %376 = vst.msk [vmem:[%s159 + $0xa8] sm:$0xff] %vm354, %v333
      %377 = vst.msk [vmem:[%s159 + $0xb0] sm:$0xff] %vm354, %v332
      %378 = vst.msk [vmem:[%s159 + $0xb8] sm:$0xff] %vm354, %v333
      %379 = vst.msk [vmem:[%s159 + $0xc0] sm:$0xff] %vm354, %v334
      %380 = vst.msk [vmem:[%s159 + $0xc8] sm:$0xff] %vm354, %v335
      %381 = vst.msk [vmem:[%s159 + $0xd0] sm:$0xff] %vm354, %v334
      %382 = vst.msk [vmem:[%s159 + $0xd8] sm:$0xff] %vm354, %v335
      %383 = vst.msk [vmem:[%s159 + $0xe0] sm:$0xff] %vm354, %v336
      %384 = vst.msk [vmem:[%s159 + $0xe8] sm:$0xff] %vm354, %v337
      %385 = vst.msk [vmem:[%s159 + $0xf0] sm:$0xff] %vm354, %v336
      %386 = vst.msk [vmem:[%s159 + $0xf8] sm:$0xff] %vm354, %v337
      %387 = vst.msk [vmem:[%s159 + $0x100] sm:$0xff] %vm354, %v338
      %388 = vst.msk [vmem:[%s159 + $0x108] sm:$0xff] %vm354, %v339
      %389 = vst.msk [vmem:[%s159 + $0x110] sm:$0xff] %vm354, %v338
      %390 = vst.msk [vmem:[%s159 + $0x118] sm:$0xff] %vm354, %v339
      %391 = vst.msk [vmem:[%s159 + $0x120] sm:$0xff] %vm354, %v340
      %392 = vst.msk [vmem:[%s159 + $0x128] sm:$0xff] %vm354, %v341
      %393 = vst.msk [vmem:[%s159 + $0x130] sm:$0xff] %vm354, %v340
      %394 = vst.msk [vmem:[%s159 + $0x138] sm:$0xff] %vm354, %v341
      %395 = vst.msk [vmem:[%s159 + $0x140] sm:$0xff] %vm354, %v342
      %396 = vst.msk [vmem:[%s159 + $0x148] sm:$0xff] %vm354, %v343
      %397 = vst.msk [vmem:[%s159 + $0x150] sm:$0xff] %vm354, %v342
      %398 = vst.msk [vmem:[%s159 + $0x158] sm:$0xff] %vm354, %v343
      %399 = vst.msk [vmem:[%s159 + $0x160] sm:$0xff] %vm354, %v344
      %400 = vst.msk [vmem:[%s159 + $0x168] sm:$0xff] %vm354, %v345
      %401 = vst.msk [vmem:[%s159 + $0x170] sm:$0xff] %vm354, %v344
      %402 = vst.msk [vmem:[%s159 + $0x178] sm:$0xff] %vm354, %v345
      %403 = vst.msk [vmem:[%s159 + $0x180] sm:$0xff] %vm354, %v346
      %404 = vst.msk [vmem:[%s159 + $0x188] sm:$0xff] %vm354, %v347
      %405 = vst.msk [vmem:[%s159 + $0x190] sm:$0xff] %vm354, %v346
      %406 = vst.msk [vmem:[%s159 + $0x198] sm:$0xff] %vm354, %v347
      %407 = vst.msk [vmem:[%s159 + $0x1a0] sm:$0xff] %vm354, %v348
      %408 = vst.msk [vmem:[%s159 + $0x1a8] sm:$0xff] %vm354, %v349
      %409 = vst.msk [vmem:[%s159 + $0x1b0] sm:$0xff] %vm354, %v348
      %410 = vst.msk [vmem:[%s159 + $0x1b8] sm:$0xff] %vm354, %v349
      %411 = vst.msk [vmem:[%s159 + $0x1c0] sm:$0xff] %vm354, %v350
      %412 = vst.msk [vmem:[%s159 + $0x1c8] sm:$0xff] %vm354, %v351
      %413 = vst.msk [vmem:[%s159 + $0x1d0] sm:$0xff] %vm354, %v350
      %414 = vst.msk [vmem:[%s159 + $0x1d8] sm:$0xff] %vm354, %v351
      %415 = vst.msk [vmem:[%s159 + $0x1e0] sm:$0xff] %vm354, %v352
      %416 = vst.msk [vmem:[%s159 + $0x1e8] sm:$0xff] %vm354, %v353
      %417 = vst.msk [vmem:[%s159 + $0x1f0] sm:$0xff] %vm354, %v352
      %418 = vst.msk [vmem:[%s159 + $0x1f8] sm:$0xff] %vm354, %v353
      %s419 = smul.u32 32, %s17
      %p420 = scmp.lt.s32.totalorder %s16, 1
      %s421 = scalar_select %p420, %s16, 1
      %p422 = scmp.lt.s32.totalorder %s419, 31
      %s423 = scalar_select %p422, %s419, 31
      %s424 = smul.addr %s423, 2
      %s425 = smul.addr %s421, 64
      %s426 = sadd.s32 %s424, %s425
      %s427 = smul.addr %s426, 8
      %s428 = scalar_lea.vmem %s1, %s427
      // Predicated region
      $region25: #{upsample_nearest_2x.1} parent=23 // pred_check
        %p429 = pneg %p72
      $region26: #{upsample_nearest_2x.1} parent=23 // pred_check_branch
        %431 = sbr.rel (%p429) target = $region28
      $region27: #{upsample_nearest_2x.1} parent=23 // pred_region
        %s432 = smul.u32 32, %s17
      $region28: #{upsample_nearest_2x.1} parent=23 // pred_fallthru
        _
    $region24: #{upsample_nearest_2x.1} parent=5 // pred_fallthru
      _
    %p433 = scmp.le.s32.totalorder 2, %s7
    // Predicated region
    $region29: #{upsample_nearest_2x.1} parent=5 // pred_check
      %p434 = pneg %p433
    $region30: #{upsample_nearest_2x.1} parent=5 // pred_check_branch
      %436 = sbr.rel (%p434) target = $region32
    $region31: #{upsample_nearest_2x.1} parent=5 // pred_region
      %s437 = ssub.s32 %s7, 2
      // Predicated region
      $region33: #{upsample_nearest_2x.1} parent=31 // pred_check
        %p438 = pneg %p78
      $region34: #{upsample_nearest_2x.1} parent=31 // pred_check_branch
        %440 = sbr.rel (%p438) target = $region36
      $region35: #{upsample_nearest_2x.1} parent=31 // pred_region
        %s441 = smul.u32 32, %s19
        %p442 = scmp.lt.s32.totalorder %s18, 1
        %s443 = scalar_select %p442, %s18, 1
        %p444 = scmp.lt.s32.totalorder %s441, 31
        %s445 = scalar_select %p444, %s441, 31
        %s446 = smul.addr %s445, 2
        %s447 = smul.addr %s443, 64
        %s448 = sadd.s32 %s446, %s447
        %s449 = smul.addr %s448, 8
        %s450 = scalar_lea.vmem %s1, %s449
      $region36: #{upsample_nearest_2x.1} parent=31 // pred_fallthru
        _
    $region32: #{upsample_nearest_2x.1} parent=5 // pred_fallthru
      _
  $region6: #{upsample_nearest_2x.1} parent=0 // loop_footer
    %s11 = sadd.s32 1, %s7
  $region7: #{upsample_nearest_2x.1} parent=0 // loop_footer_branch
    %6 = sbr.rel target = $region3
  $region8: #{upsample_nearest_2x.1} parent=0 // loop_exit
    _

</llo_original>
